<compile_context>
chip_gen: v5e
topology: v5e:2x2
jax: 0.10.0
libtpu: 0.0.40
codegen_flags: <defaults>
</compile_context>

<pallas_src>
import jax
import jax.numpy as jnp
from jax import lax
from jax.experimental import pallas as pl
from jax.experimental.pallas import tpu as pltpu

DP = 128          # padded feature width (lane-dense)
N_LAYERS = 6


# ----------------------------------------------------------------------------
# Fused Pallas kernel: one grid step == one graph; all 7 layers VMEM-resident.
# ----------------------------------------------------------------------------
def _fused_bgcn_kernel(scales_ref, adj_ref, h_ref, ws_ref, bs_ref, o_ref):
    # scales_ref : SMEM (6,)          sigmoid(att_weight) per conv layer
    # adj_ref    : VMEM [1, NI, NR]   normalized adjacency read -> intron (f32)
    # h_ref      : VMEM [1, NR, DP]   read-node features, zero-padded, bf16
    # ws_ref     : VMEM [7, DP, DP]   padded conv weights (6) + fc weight (1), bf16
    # bs_ref     : VMEM [7, 1, DP]    padded conv biases  (6) + fc bias   (1), f32
    # o_ref      : VMEM [1, NR, DP]   lane-dense output slab (logits in cols 0:2)
    a_ri = adj_ref[0]                 # [NI, NR]
    a_ir = a_ri.T                     # [NR, NI]  single transpose, reused by odd layers
    h_r = h_ref[0]                    # [NR, DP] bf16
    h_i = None
    # Straight-line unrolled layer sequence; reassociated as A @ (H @ W).
    for i in range(N_LAYERS):
        w = ws_ref[i]                 # [DP, DP] bf16  (static-index slice, free)
        b = bs_ref[i]                 # [1, DP]  f32
        s = scales_ref[i]             # SMEM scalar
        src = h_r if i % 2 == 0 else h_i
        hw = jnp.dot(src, w, preferred_element_type=jnp.float32)   # bf16 x bf16 -> f32
        if i % 2 == 0:                # read -> intron
            pre = jnp.dot(a_ri, hw, preferred_element_type=jnp.float32)
        else:                         # intron -> read (transposed contraction)
            pre = jnp.dot(a_ir, hw, preferred_element_type=jnp.float32)
        act = jnp.maximum((pre + b) * s, 0.0).astype(jnp.bfloat16)
        if i % 2 == 0:
            h_i = act
        else:
            h_r = act
    # Final Linear (padded to DP lanes; real output lives in columns 0:2).
    o_ref[0] = (jnp.dot(h_r, ws_ref[N_LAYERS], preferred_element_type=jnp.float32)
                + bs_ref[N_LAYERS])


# ----------------------------------------------------------------------------
# One-time parameter preparation (hoisted out of the per-call path)
# ----------------------------------------------------------------------------
def _pad2(x, rows, cols):
    return jnp.pad(x, ((0, rows - x.shape[0]), (0, cols - x.shape[1])))


def prepare_params(params):
    """Pad every feature dim to DP=128, stack, cast weights to bf16, apply sigmoid.

    Padded rows/cols of W and padded bias lanes are zero, so padded lanes stay
    exactly zero through all layers; the math on the real columns is unchanged.
    Called ONCE; the results are reused for every forward call.
    """
    ws = jnp.stack([_pad2(w, DP, DP) for w in params["conv_w"]]
                   + [_pad2(params["fc_w"], DP, DP)]).astype(jnp.bfloat16)  # [7,DP,DP]
    bs = jnp.stack([_pad2(b, 1, DP) for b in params["conv_b"]]
                   + [_pad2(params["fc_b"], 1, DP)]).astype(jnp.float32)    # [7,1,DP]
    scales = jax.nn.sigmoid(jnp.concatenate(params["att_w"])).astype(jnp.float32)  # (6,)
    return dict(ws=ws, bs=bs, scales=scales)


# ----------------------------------------------------------------------------
# Forward wrapper: one pallas_call for a whole batch of graphs
# ----------------------------------------------------------------------------
@jax.jit
def bipartite_gcn_forward(prep, adj_r2i_norm, h_read):
    """prep: prepared params; adj_r2i_norm: [G, NI, NR] f32; h_read: [G, NR, C_in] f32.

    Returns logits [G, NR, 2].
    """
    G, NI, NR = adj_r2i_norm.shape
    h_p = jnp.pad(h_read,
                  ((0, 0), (0, 0), (0, DP - h_read.shape[-1]))).astype(jnp.bfloat16)

    out_pad = pl.pallas_call(
        _fused_bgcn_kernel,
        out_shape=jax.ShapeDtypeStruct((G, NR, DP), jnp.float32),
        grid=(G,),
        in_specs=[
            pl.BlockSpec(memory_space=pltpu.MemorySpace.SMEM),      # att scales (6,)
            pl.BlockSpec((1, NI, NR), lambda g: (g, 0, 0)),         # per-graph adjacency
            pl.BlockSpec((1, NR, DP), lambda g: (g, 0, 0)),         # per-graph features
            pl.BlockSpec(memory_space=pltpu.MemorySpace.VMEM),      # stacked W (bf16)
            pl.BlockSpec(memory_space=pltpu.MemorySpace.VMEM),      # stacked b (f32)
        ],
        out_specs=pl.BlockSpec((1, NR, DP), lambda g: (g, 0, 0)),
        compiler_params=pltpu.CompilerParams(
            dimension_semantics=("parallel",)),                     # 2 TCs on v7x
    )(prep["scales"], adj_r2i_norm, h_p, prep["ws"], prep["bs"])

    return out_pad[:, :, :2]   # one slice for the whole batch


# ----------------------------------------------------------------------------
# Plain-JAX glue: graph normalization, parameters, reference
# ----------------------------------------------------------------------------
def normalize_adj(a):
    """DGL GraphConv norm='both': D_dst^{-1/2} A D_src^{-1/2} (degrees clamped to >=1).

    Works batched on [..., NI, NR]. Note norm(A^T) == norm(A)^T under this rule,
    so only one orientation needs to be stored.
    """
    deg_dst = jnp.maximum(a.sum(axis=-1, keepdims=True), 1.0)
    deg_src = jnp.maximum(a.sum(axis=-2, keepdims=True), 1.0)
    return a * (deg_dst ** -0.5) * (deg_src ** -0.5)


def glorot(key, shape):
    fan_in, fan_out = shape
    lim = jnp.sqrt(6.0 / (fan_in + fan_out))
    return jax.random.uniform(key, shape, jnp.float32, -lim, lim)


def init_params(key, in_channels, out_channels):
    dims = [(in_channels, 64), (64, 128), (128, 128),
            (128, 128), (128, 128), (128, out_channels)]
    keys = jax.random.split(key, 2 * len(dims) + 1)
    conv_w, conv_b, att_w = [], [], []
    for i, (di, do) in enumerate(dims):
        conv_w.append(glorot(keys[2 * i], (di, do)))
        conv_b.append(jnp.zeros((1, do), jnp.float32))
        att_w.append(jax.random.normal(keys[2 * i + 1], (1,), jnp.float32))
    fc_key_w, fc_key_b = jax.random.split(keys[-1])
    fc_w = glorot(fc_key_w, (out_channels, 2))
    fc_b = jax.random.uniform(fc_key_b, (1, 2), jnp.float32, -1.0, 1.0)
    # NOTE: the module's `self.weights` ParameterList is never used in forward().
    return dict(conv_w=conv_w, conv_b=conv_b, att_w=att_w, fc_w=fc_w, fc_b=fc_b)


def _reference_single(prep, a_ri, h_r_p):
    """Dtype-matched plain-JAX reference (same padded bf16 weights, same association)."""
    a_ir = a_ri.T
    h_r, h_i = h_r_p, None
    for i in range(N_LAYERS):
        w, b, s = prep["ws"][i], prep["bs"][i], prep["scales"][i]
        src = h_r if i % 2 == 0 else h_i
        hw = jnp.dot(src, w, preferred_element_type=jnp.float32)
        a = a_ri if i % 2 == 0 else a_ir
        pre = jnp.dot(a, hw, preferred_element_type=jnp.float32)
        act = jnp.maximum((pre + b) * s, 0.0).astype(jnp.bfloat16)
        if i % 2 == 0:
            h_i = act
        else:
            h_r = act
    out = (jnp.dot(h_r, prep["ws"][N_LAYERS], preferred_element_type=jnp.float32)
           + prep["bs"][N_LAYERS])
    return out[:, :2]


def bipartite_gcn_reference(prep, adj_r2i_norm, h_read):
    h_p = jnp.pad(h_read,
                  ((0, 0), (0, 0), (0, DP - h_read.shape[-1]))).astype(jnp.bfloat16)
    return jax.vmap(_reference_single, in_axes=(None, 0, 0))(prep, adj_r2i_norm, h_p)


# ----------------------------------------------------------------------------
if __name__ == "__main__":
    G, N_READ, N_INTRON = 4, 16, 24
    IN_CHANNELS, OUT_CHANNELS = 10, 4

    root = jax.random.PRNGKey(0)
    k_feat, k_adj, k_param = jax.random.split(root, 3)

    # Batch of G graphs: read-node features + random bipartite adjacencies.
    # TODO(synk): the torch module draws fresh randn intron features each call,
    # but they are overwritten at i=0 before ever being read, so they are omitted.
    h_read = jax.random.normal(k_feat, (G, N_READ, IN_CHANNELS), jnp.float32)
    a_r2i = (jax.random.uniform(k_adj, (G, N_INTRON, N_READ)) < 0.3).astype(jnp.float32)
    a_r2i_norm = normalize_adj(a_r2i)   # reverse direction == transpose, not stored

    params = init_params(k_param, IN_CHANNELS, OUT_CHANNELS)
    prep = prepare_params(params)       # one-time padded/stacked/bf16 weights

    out = bipartite_gcn_forward(prep, a_r2i_norm, h_read)
    out = jax.block_until_ready(out)

    ref = bipartite_gcn_reference(prep, a_r2i_norm, h_read)
    assert out.shape == (G, N_READ, 2)
    # bf16 weights are intentional (perf review); compare like-for-like against the
    # dtype-matched reference. Residual diff is only MXU-vs-XLA accumulation order.
    assert jnp.allclose(out, ref, atol=2e-2, rtol=2e-2), "mismatch vs reference"

    print("KERNEL_OK")
</pallas_src>

<mosaic_0001>
module attributes {stable_mosaic.version = 11 : i64} {
  func.func @_fused_bgcn_kernel(%arg0: i32, %arg1: memref<6xf32, #tpu.memory_space<smem>>, %arg2: memref<1x24x16xf32, #tpu.memory_space<vmem>>, %arg3: memref<1x16x128xbf16, #tpu.memory_space<vmem>>, %arg4: memref<7x128x128xbf16, #tpu.memory_space<vmem>>, %arg5: memref<7x1x128xf32, #tpu.memory_space<vmem>>, %arg6: memref<1x16x128xf32, #tpu.memory_space<vmem>>) attributes {dimension_semantics = [#tpu.dimension_semantics<parallel>], iteration_bounds = array<i64: 4>, scalar_prefetch = 0 : i64, scratch_operands = 0 : i64, tpu.core_type = #tpu.core_type<tc>, window_params = [{transform_indices = @transform_0, window_bounds = array<i64: 6>}, {transform_indices = @transform_1, window_bounds = array<i64: 1, 24, 16>}, {transform_indices = @transform_2, window_bounds = array<i64: 1, 16, 128>}, {pipeline_mode = #tpu.pipeline_mode<synchronous>, transform_indices = @transform_3, window_bounds = array<i64: 7, 128, 128>}, {pipeline_mode = #tpu.pipeline_mode<synchronous>, transform_indices = @transform_4, window_bounds = array<i64: 7, 1, 128>}, {transform_indices = @transform_5, window_bounds = array<i64: 1, 16, 128>}]} {
    %c0 = arith.constant 0 : index
    %c0_0 = arith.constant 0 : index
    %c0_1 = arith.constant 0 : index
    %0 = vector.load %arg2[%c0, %c0_0, %c0_1] : memref<1x24x16xf32, #tpu.memory_space<vmem>>, vector<1x24x16xf32>
    %1 = vector.shape_cast %0 : vector<1x24x16xf32> to vector<24x16xf32>
    %2 = tpu.transpose %1, [1, 0] : vector<24x16xf32> -> vector<16x24xf32>
    %c0_2 = arith.constant 0 : index
    %c0_3 = arith.constant 0 : index
    %c0_4 = arith.constant 0 : index
    %3 = vector.load %arg3[%c0_2, %c0_3, %c0_4] : memref<1x16x128xbf16, #tpu.memory_space<vmem>>, vector<1x16x128xbf16>
    %4 = vector.shape_cast %3 : vector<1x16x128xbf16> to vector<16x128xbf16>
    %c0_5 = arith.constant 0 : index
    %c0_6 = arith.constant 0 : index
    %c0_7 = arith.constant 0 : index
    %5 = vector.load %arg4[%c0_5, %c0_6, %c0_7] : memref<7x128x128xbf16, #tpu.memory_space<vmem>>, vector<1x128x128xbf16>
    %6 = vector.shape_cast %5 : vector<1x128x128xbf16> to vector<128x128xbf16>
    %c0_8 = arith.constant 0 : index
    %c0_9 = arith.constant 0 : index
    %c0_10 = arith.constant 0 : index
    %7 = vector.load %arg5[%c0_8, %c0_9, %c0_10] : memref<7x1x128xf32, #tpu.memory_space<vmem>>, vector<1x1x128xf32>
    %8 = vector.shape_cast %7 : vector<1x1x128xf32> to vector<1x128xf32>
    %c0_11 = arith.constant 0 : index
    %9 = memref.load %arg1[%c0_11] : memref<6xf32, #tpu.memory_space<smem>>
    %cst = arith.constant dense<0.000000e+00> : vector<16x128xf32>
    %10 = tpu.matmul %4, %6, %cst {dimension_numbers = #tpu.dot_dimension_numbers<[1], [0], [0], [1], [0, 0, 1, 1], [], []>} : vector<16x128xbf16>, vector<128x128xbf16>, vector<16x128xf32> -> vector<16x128xf32>
    %cst_12 = arith.constant dense<0.000000e+00> : vector<24x128xf32>
    %11 = tpu.matmul %1, %10, %cst_12 {dimension_numbers = #tpu.dot_dimension_numbers<[1], [0], [0], [1], [0, 0, 1, 1], [], []>} : vector<24x16xf32>, vector<16x128xf32>, vector<24x128xf32> -> vector<24x128xf32>
    %12 = vector.broadcast %8 : vector<1x128xf32> to vector<24x128xf32>
    %13 = arith.addf %11, %12 : vector<24x128xf32>
    %14 = vector.broadcast %9 : f32 to vector<24x128xf32>
    %15 = arith.mulf %13, %14 : vector<24x128xf32>
    %cst_13 = arith.constant 0.000000e+00 : f32
    %16 = vector.broadcast %cst_13 : f32 to vector<24x128xf32>
    %17 = arith.maximumf %15, %16 : vector<24x128xf32>
    %18 = arith.truncf %17 : vector<24x128xf32> to vector<24x128xbf16>
    %c1 = arith.constant 1 : index
    %c0_14 = arith.constant 0 : index
    %c0_15 = arith.constant 0 : index
    %19 = vector.load %arg4[%c1, %c0_14, %c0_15] : memref<7x128x128xbf16, #tpu.memory_space<vmem>>, vector<1x128x128xbf16>
    %20 = vector.shape_cast %19 : vector<1x128x128xbf16> to vector<128x128xbf16>
    %c1_16 = arith.constant 1 : index
    %c0_17 = arith.constant 0 : index
    %c0_18 = arith.constant 0 : index
    %21 = vector.load %arg5[%c1_16, %c0_17, %c0_18] : memref<7x1x128xf32, #tpu.memory_space<vmem>>, vector<1x1x128xf32>
    %22 = vector.shape_cast %21 : vector<1x1x128xf32> to vector<1x128xf32>
    %c1_19 = arith.constant 1 : index
    %23 = memref.load %arg1[%c1_19] : memref<6xf32, #tpu.memory_space<smem>>
    %cst_20 = arith.constant dense<0.000000e+00> : vector<24x128xf32>
    %24 = tpu.matmul %18, %20, %cst_20 {dimension_numbers = #tpu.dot_dimension_numbers<[1], [0], [0], [1], [0, 0, 1, 1], [], []>} : vector<24x128xbf16>, vector<128x128xbf16>, vector<24x128xf32> -> vector<24x128xf32>
    %cst_21 = arith.constant dense<0.000000e+00> : vector<16x128xf32>
    %25 = tpu.matmul %2, %24, %cst_21 {dimension_numbers = #tpu.dot_dimension_numbers<[1], [0], [0], [1], [0, 0, 1, 1], [], []>} : vector<16x24xf32>, vector<24x128xf32>, vector<16x128xf32> -> vector<16x128xf32>
    %26 = vector.broadcast %22 : vector<1x128xf32> to vector<16x128xf32>
    %27 = arith.addf %25, %26 : vector<16x128xf32>
    %28 = vector.broadcast %23 : f32 to vector<16x128xf32>
    %29 = arith.mulf %27, %28 : vector<16x128xf32>
    %cst_22 = arith.constant 0.000000e+00 : f32
    %30 = vector.broadcast %cst_22 : f32 to vector<16x128xf32>
    %31 = arith.maximumf %29, %30 : vector<16x128xf32>
    %32 = arith.truncf %31 : vector<16x128xf32> to vector<16x128xbf16>
    %c2 = arith.constant 2 : index
    %c0_23 = arith.constant 0 : index
    %c0_24 = arith.constant 0 : index
    %33 = vector.load %arg4[%c2, %c0_23, %c0_24] : memref<7x128x128xbf16, #tpu.memory_space<vmem>>, vector<1x128x128xbf16>
    %34 = vector.shape_cast %33 : vector<1x128x128xbf16> to vector<128x128xbf16>
    %c2_25 = arith.constant 2 : index
    %c0_26 = arith.constant 0 : index
    %c0_27 = arith.constant 0 : index
    %35 = vector.load %arg5[%c2_25, %c0_26, %c0_27] : memref<7x1x128xf32, #tpu.memory_space<vmem>>, vector<1x1x128xf32>
    %36 = vector.shape_cast %35 : vector<1x1x128xf32> to vector<1x128xf32>
    %c2_28 = arith.constant 2 : index
    %37 = memref.load %arg1[%c2_28] : memref<6xf32, #tpu.memory_space<smem>>
    %cst_29 = arith.constant dense<0.000000e+00> : vector<16x128xf32>
    %38 = tpu.matmul %32, %34, %cst_29 {dimension_numbers = #tpu.dot_dimension_numbers<[1], [0], [0], [1], [0, 0, 1, 1], [], []>} : vector<16x128xbf16>, vector<128x128xbf16>, vector<16x128xf32> -> vector<16x128xf32>
    %cst_30 = arith.constant dense<0.000000e+00> : vector<24x128xf32>
    %39 = tpu.matmul %1, %38, %cst_30 {dimension_numbers = #tpu.dot_dimension_numbers<[1], [0], [0], [1], [0, 0, 1, 1], [], []>} : vector<24x16xf32>, vector<16x128xf32>, vector<24x128xf32> -> vector<24x128xf32>
    %40 = vector.broadcast %36 : vector<1x128xf32> to vector<24x128xf32>
    %41 = arith.addf %39, %40 : vector<24x128xf32>
    %42 = vector.broadcast %37 : f32 to vector<24x128xf32>
    %43 = arith.mulf %41, %42 : vector<24x128xf32>
    %cst_31 = arith.constant 0.000000e+00 : f32
    %44 = vector.broadcast %cst_31 : f32 to vector<24x128xf32>
    %45 = arith.maximumf %43, %44 : vector<24x128xf32>
    %46 = arith.truncf %45 : vector<24x128xf32> to vector<24x128xbf16>
    %c3 = arith.constant 3 : index
    %c0_32 = arith.constant 0 : index
    %c0_33 = arith.constant 0 : index
    %47 = vector.load %arg4[%c3, %c0_32, %c0_33] : memref<7x128x128xbf16, #tpu.memory_space<vmem>>, vector<1x128x128xbf16>
    %48 = vector.shape_cast %47 : vector<1x128x128xbf16> to vector<128x128xbf16>
    %c3_34 = arith.constant 3 : index
    %c0_35 = arith.constant 0 : index
    %c0_36 = arith.constant 0 : index
    %49 = vector.load %arg5[%c3_34, %c0_35, %c0_36] : memref<7x1x128xf32, #tpu.memory_space<vmem>>, vector<1x1x128xf32>
    %50 = vector.shape_cast %49 : vector<1x1x128xf32> to vector<1x128xf32>
    %c3_37 = arith.constant 3 : index
    %51 = memref.load %arg1[%c3_37] : memref<6xf32, #tpu.memory_space<smem>>
    %cst_38 = arith.constant dense<0.000000e+00> : vector<24x128xf32>
    %52 = tpu.matmul %46, %48, %cst_38 {dimension_numbers = #tpu.dot_dimension_numbers<[1], [0], [0], [1], [0, 0, 1, 1], [], []>} : vector<24x128xbf16>, vector<128x128xbf16>, vector<24x128xf32> -> vector<24x128xf32>
    %cst_39 = arith.constant dense<0.000000e+00> : vector<16x128xf32>
    %53 = tpu.matmul %2, %52, %cst_39 {dimension_numbers = #tpu.dot_dimension_numbers<[1], [0], [0], [1], [0, 0, 1, 1], [], []>} : vector<16x24xf32>, vector<24x128xf32>, vector<16x128xf32> -> vector<16x128xf32>
    %54 = vector.broadcast %50 : vector<1x128xf32> to vector<16x128xf32>
    %55 = arith.addf %53, %54 : vector<16x128xf32>
    %56 = vector.broadcast %51 : f32 to vector<16x128xf32>
    %57 = arith.mulf %55, %56 : vector<16x128xf32>
    %cst_40 = arith.constant 0.000000e+00 : f32
    %58 = vector.broadcast %cst_40 : f32 to vector<16x128xf32>
    %59 = arith.maximumf %57, %58 : vector<16x128xf32>
    %60 = arith.truncf %59 : vector<16x128xf32> to vector<16x128xbf16>
    %c4 = arith.constant 4 : index
    %c0_41 = arith.constant 0 : index
    %c0_42 = arith.constant 0 : index
    %61 = vector.load %arg4[%c4, %c0_41, %c0_42] : memref<7x128x128xbf16, #tpu.memory_space<vmem>>, vector<1x128x128xbf16>
    %62 = vector.shape_cast %61 : vector<1x128x128xbf16> to vector<128x128xbf16>
    %c4_43 = arith.constant 4 : index
    %c0_44 = arith.constant 0 : index
    %c0_45 = arith.constant 0 : index
    %63 = vector.load %arg5[%c4_43, %c0_44, %c0_45] : memref<7x1x128xf32, #tpu.memory_space<vmem>>, vector<1x1x128xf32>
    %64 = vector.shape_cast %63 : vector<1x1x128xf32> to vector<1x128xf32>
    %c4_46 = arith.constant 4 : index
    %65 = memref.load %arg1[%c4_46] : memref<6xf32, #tpu.memory_space<smem>>
    %cst_47 = arith.constant dense<0.000000e+00> : vector<16x128xf32>
    %66 = tpu.matmul %60, %62, %cst_47 {dimension_numbers = #tpu.dot_dimension_numbers<[1], [0], [0], [1], [0, 0, 1, 1], [], []>} : vector<16x128xbf16>, vector<128x128xbf16>, vector<16x128xf32> -> vector<16x128xf32>
    %cst_48 = arith.constant dense<0.000000e+00> : vector<24x128xf32>
    %67 = tpu.matmul %1, %66, %cst_48 {dimension_numbers = #tpu.dot_dimension_numbers<[1], [0], [0], [1], [0, 0, 1, 1], [], []>} : vector<24x16xf32>, vector<16x128xf32>, vector<24x128xf32> -> vector<24x128xf32>
    %68 = vector.broadcast %64 : vector<1x128xf32> to vector<24x128xf32>
    %69 = arith.addf %67, %68 : vector<24x128xf32>
    %70 = vector.broadcast %65 : f32 to vector<24x128xf32>
    %71 = arith.mulf %69, %70 : vector<24x128xf32>
    %cst_49 = arith.constant 0.000000e+00 : f32
    %72 = vector.broadcast %cst_49 : f32 to vector<24x128xf32>
    %73 = arith.maximumf %71, %72 : vector<24x128xf32>
    %74 = arith.truncf %73 : vector<24x128xf32> to vector<24x128xbf16>
    %c5 = arith.constant 5 : index
    %c0_50 = arith.constant 0 : index
    %c0_51 = arith.constant 0 : index
    %75 = vector.load %arg4[%c5, %c0_50, %c0_51] : memref<7x128x128xbf16, #tpu.memory_space<vmem>>, vector<1x128x128xbf16>
    %76 = vector.shape_cast %75 : vector<1x128x128xbf16> to vector<128x128xbf16>
    %c5_52 = arith.constant 5 : index
    %c0_53 = arith.constant 0 : index
    %c0_54 = arith.constant 0 : index
    %77 = vector.load %arg5[%c5_52, %c0_53, %c0_54] : memref<7x1x128xf32, #tpu.memory_space<vmem>>, vector<1x1x128xf32>
    %78 = vector.shape_cast %77 : vector<1x1x128xf32> to vector<1x128xf32>
    %c5_55 = arith.constant 5 : index
    %79 = memref.load %arg1[%c5_55] : memref<6xf32, #tpu.memory_space<smem>>
    %cst_56 = arith.constant dense<0.000000e+00> : vector<24x128xf32>
    %80 = tpu.matmul %74, %76, %cst_56 {dimension_numbers = #tpu.dot_dimension_numbers<[1], [0], [0], [1], [0, 0, 1, 1], [], []>} : vector<24x128xbf16>, vector<128x128xbf16>, vector<24x128xf32> -> vector<24x128xf32>
    %cst_57 = arith.constant dense<0.000000e+00> : vector<16x128xf32>
    %81 = tpu.matmul %2, %80, %cst_57 {dimension_numbers = #tpu.dot_dimension_numbers<[1], [0], [0], [1], [0, 0, 1, 1], [], []>} : vector<16x24xf32>, vector<24x128xf32>, vector<16x128xf32> -> vector<16x128xf32>
    %82 = vector.broadcast %78 : vector<1x128xf32> to vector<16x128xf32>
    %83 = arith.addf %81, %82 : vector<16x128xf32>
    %84 = vector.broadcast %79 : f32 to vector<16x128xf32>
    %85 = arith.mulf %83, %84 : vector<16x128xf32>
    %cst_58 = arith.constant 0.000000e+00 : f32
    %86 = vector.broadcast %cst_58 : f32 to vector<16x128xf32>
    %87 = arith.maximumf %85, %86 : vector<16x128xf32>
    %88 = arith.truncf %87 : vector<16x128xf32> to vector<16x128xbf16>
    %c6 = arith.constant 6 : index
    %c0_59 = arith.constant 0 : index
    %c0_60 = arith.constant 0 : index
    %89 = vector.load %arg4[%c6, %c0_59, %c0_60] : memref<7x128x128xbf16, #tpu.memory_space<vmem>>, vector<1x128x128xbf16>
    %90 = vector.shape_cast %89 : vector<1x128x128xbf16> to vector<128x128xbf16>
    %cst_61 = arith.constant dense<0.000000e+00> : vector<16x128xf32>
    %91 = tpu.matmul %88, %90, %cst_61 {dimension_numbers = #tpu.dot_dimension_numbers<[1], [0], [0], [1], [0, 0, 1, 1], [], []>} : vector<16x128xbf16>, vector<128x128xbf16>, vector<16x128xf32> -> vector<16x128xf32>
    %c6_62 = arith.constant 6 : index
    %c0_63 = arith.constant 0 : index
    %c0_64 = arith.constant 0 : index
    %92 = vector.load %arg5[%c6_62, %c0_63, %c0_64] : memref<7x1x128xf32, #tpu.memory_space<vmem>>, vector<1x1x128xf32>
    %93 = vector.shape_cast %92 : vector<1x1x128xf32> to vector<1x128xf32>
    %94 = vector.broadcast %93 : vector<1x128xf32> to vector<16x128xf32>
    %95 = arith.addf %91, %94 : vector<16x128xf32>
    %c0_65 = arith.constant 0 : index
    %c0_66 = arith.constant 0 : index
    %c0_67 = arith.constant 0 : index
    %96 = vector.load %arg6[%c0_65, %c0_66, %c0_67] : memref<1x16x128xf32, #tpu.memory_space<vmem>>, vector<1x16x128xf32>
    %97 = vector.shape_cast %96 : vector<1x16x128xf32> to vector<16x128xf32>
    %98 = vector.shape_cast %95 : vector<16x128xf32> to vector<1x16x128xf32>
    tpu.vector_store %arg6[%c0_65, %c0_66, %c0_67], %98 {strides = array<i32>} : memref<1x16x128xf32, #tpu.memory_space<vmem>>, vector<1x16x128xf32>,
    return
  }
  func.func @transform_0(%arg0: i32) -> i32 {
    %c0_i32 = arith.constant 0 : i32
    %c0_i32_0 = arith.constant 0 : i32
    return %c0_i32 : i32
  }
  func.func @transform_1(%arg0: i32) -> (i32, i32, i32) {
    %c0_i32 = arith.constant 0 : i32
    %c0_i32_0 = arith.constant 0 : i32
    %c0_i32_1 = arith.constant 0 : i32
    return %arg0, %c0_i32, %c0_i32_0 : i32, i32, i32
  }
  func.func @transform_2(%arg0: i32) -> (i32, i32, i32) {
    %c0_i32 = arith.constant 0 : i32
    %c0_i32_0 = arith.constant 0 : i32
    %c0_i32_1 = arith.constant 0 : i32
    return %arg0, %c0_i32, %c0_i32_0 : i32, i32, i32
  }
  func.func @transform_3(%arg0: i32) -> (i32, i32, i32) {
    %c0_i32 = arith.constant 0 : i32
    %c0_i32_0 = arith.constant 0 : i32
    %c0_i32_1 = arith.constant 0 : i32
    %c0_i32_2 = arith.constant 0 : i32
    return %c0_i32, %c0_i32_0, %c0_i32_1 : i32, i32, i32
  }
  func.func @transform_4(%arg0: i32) -> (i32, i32, i32) {
    %c0_i32 = arith.constant 0 : i32
    %c0_i32_0 = arith.constant 0 : i32
    %c0_i32_1 = arith.constant 0 : i32
    %c0_i32_2 = arith.constant 0 : i32
    return %c0_i32, %c0_i32_0, %c0_i32_1 : i32, i32, i32
  }
  func.func @transform_5(%arg0: i32) -> (i32, i32, i32) {
    %c0_i32 = arith.constant 0 : i32
    %c0_i32_0 = arith.constant 0 : i32
    %c0_i32_1 = arith.constant 0 : i32
    return %arg0, %c0_i32, %c0_i32_0 : i32, i32, i32
  }
}

</mosaic_0001>

<llo_original>
// kernel: bipartite_gcn_forward.1
$region0: #{bipartite_gcn_forward.1}
  #allocation0 [shape = 'u32[]', space=smem, size = 0x4, offset = 0x4, fixed_abs, tag = 'smem constant byte address 0x4 - core index']
  #allocation1 [shape = 'u32[72,128]{1,0:T(1,128)}', space=vmem, size = 0x9000, scoped, tag = 'internal scratch']
  %s0 = inlined_call_operand.vmem [shape: f32[6], index: 0, kind: input, shape index: {}]
  %s1 = inlined_call_operand.vmem [shape: f32[4,24,16], index: 1, kind: input, shape index: {}]
  %s2 = inlined_call_operand.vmem [shape: bf16[4,16,128], index: 2, kind: input, shape index: {}]
  %s3 = inlined_call_operand.hbm [shape: bf16[7,128,128], index: 3, kind: input, shape index: {}]
  %s4 = inlined_call_operand.vmem [shape: f32[7,1,128], index: 4, kind: input, shape index: {}]
  %s5 = inlined_call_operand.vmem [shape: f32[4,16,128], index: 5, kind: output, shape index: {}]
  %s6 = sld [smem:[#allocation0]]
  $region61: #{bipartite_gcn_forward.1} parent=0
    _
  %s8 = ssub.s32 1, %s6
  %s9 = scalar_select 0, %s8, %s6
  $region1: #{bipartite_gcn_forward.1} parent=0
    #allocation2 [shape = 'u8[512]{0}', space=smem, size = 0x200, scoped, tag = 'input window, operand 0, single buffered']
    #allocation3 [shape = 's32[2]{0}', space=sflag, size = 0x8, scoped, tag = 'scoped memory for bipartite_gcn_forward.1']
    #allocation4 [shape = 's32[2]{0}', space=sflag, size = 0x8, scoped, tag = 'scoped memory for bipartite_gcn_forward.1']
    #allocation5 [shape = 'u8[229376]{0}', space=vmem, size = 0x38000, scoped, tag = 'input window, operand 3, single buffered']
    %10 = vsyncpa [#allocation4], 0
    %11 = vsyncpa [#allocation3], 0
    loop: start=0, step=1, limit=6
    $region2: #{bipartite_gcn_forward.1} parent=1 // loop_pre_header
      _
    $region3: #{bipartite_gcn_forward.1} parent=1 // loop_header
      %s13 = sphi 0, %s17
      %p14 = scmp.ge.s32.totalorder %s13, 6
      %s21 = sphi 0, %s21
      %s23 = sphi 0, %s21
      %s24 = sphi 0, %s23
      %s38 = sphi 0, %s24
      %s44 = sphi 0, %s46
      %s47 = sphi 0, %s44
      %s48 = sphi 0, %s47
      %s64 = sphi 0, %s48
      %s70 = sphi 0, %s72
      %s73 = sphi 0, %s70
      %s74 = sphi 0, %s73
      %s90 = sphi 0, %s74
      %s94 = sphi 0, %s94
      %s96 = sphi 0, %s94
      %s97 = sphi 0, %s96
      %s111 = sphi 0, %s97
      %s115 = sphi 0, %s115
      %s117 = sphi 0, %s115
      %s118 = sphi 0, %s117
      %s132 = sphi 0, %s118
      %s138 = sphi 0, %s140
      %s141 = sphi 0, %s138
      %s142 = sphi 0, %s141
      %s158 = sphi 0, %s142
    $region4: #{bipartite_gcn_forward.1} parent=1 // loop_header_branch
      %16 = sbr.rel (%p14) target = $region8
    $region5: #{bipartite_gcn_forward.1} parent=1 // loop_body
      %s18 = ssub.s32 %s13, 1
      %s19 = ssub.s32 %s13, 2
      %s20 = sadd.s32 %s13, 1
      %s22 = sadd.s32 %s21, 1
      %p25 = scmp.eq.s32.totalorder %s13, 3
      %p26 = scmp.ne.s32.totalorder %s21, %s23
      %p27 = scmp.eq.s32.totalorder %s13, 0
      %p28 = por %p26, %p27
      %p29 = scmp.ne.s32.totalorder %s21, %s23
      %p30 = scmp.eq.s32.totalorder %s18, 3
      %p31 = por %p29, %p30
      %p32 = scmp.ne.s32.totalorder %s23, %s24
      %p33 = scmp.eq.s32.totalorder %s18, 0
      %p34 = por %p32, %p33
      %p35 = scmp.ne.s32.totalorder %s23, %s24
      %p36 = scmp.eq.s32.totalorder %s19, 3
      %p37 = por %p35, %p36
      %p39 = scmp.ne.s32.totalorder %s24, %s38
      %p40 = scmp.eq.s32.totalorder %s19, 0
      %p41 = por %p39, %p40
      %s42 = ssub.s32 %s13, %s20
      %p43 = scmp.eq.s32.totalorder %s42, 0
      %s45 = sadd.s32 %s44, 1
      %s46 = scalar_select %p43, %s44, %s45
      %p49 = pneg %p43
      %p50 = scmp.eq.s32.totalorder %s13, 3
      %p51 = por %p49, %p50
      %p52 = scmp.ne.s32.totalorder %s44, %s47
      %p53 = scmp.eq.s32.totalorder %s13, 0
      %p54 = por %p52, %p53
      %p55 = scmp.ne.s32.totalorder %s44, %s47
      %p56 = scmp.eq.s32.totalorder %s18, 3
      %p57 = por %p55, %p56
      %p58 = scmp.ne.s32.totalorder %s47, %s48
      %p59 = scmp.eq.s32.totalorder %s18, 0
      %p60 = por %p58, %p59
      %p61 = scmp.ne.s32.totalorder %s47, %s48
      %p62 = scmp.eq.s32.totalorder %s19, 3
      %p63 = por %p61, %p62
      %p65 = scmp.ne.s32.totalorder %s48, %s64
      %p66 = scmp.eq.s32.totalorder %s19, 0
      %p67 = por %p65, %p66
      %s68 = ssub.s32 %s13, %s20
      %p69 = scmp.eq.s32.totalorder %s68, 0
      %s71 = sadd.s32 %s70, 1
      %s72 = scalar_select %p69, %s70, %s71
      %p75 = pneg %p69
      %p76 = scmp.eq.s32.totalorder %s13, 3
      %p77 = por %p75, %p76
      %p78 = scmp.ne.s32.totalorder %s70, %s73
      %p79 = scmp.eq.s32.totalorder %s13, 0
      %p80 = por %p78, %p79
      %p81 = scmp.ne.s32.totalorder %s70, %s73
      %p82 = scmp.eq.s32.totalorder %s18, 3
      %p83 = por %p81, %p82
      %p84 = scmp.ne.s32.totalorder %s73, %s74
      %p85 = scmp.eq.s32.totalorder %s18, 0
      %p86 = por %p84, %p85
      %p87 = scmp.ne.s32.totalorder %s73, %s74
      %p88 = scmp.eq.s32.totalorder %s19, 3
      %p89 = por %p87, %p88
      %p91 = scmp.ne.s32.totalorder %s74, %s90
      %p92 = scmp.eq.s32.totalorder %s19, 0
      %p93 = por %p91, %p92
      %s95 = sadd.s32 %s94, 1
      %p98 = scmp.eq.s32.totalorder %s13, 3
      %p99 = scmp.ne.s32.totalorder %s94, %s96
      %p100 = scmp.eq.s32.totalorder %s13, 0
      %p101 = por %p99, %p100
      %p102 = scmp.ne.s32.totalorder %s94, %s96
      %p103 = scmp.eq.s32.totalorder %s18, 3
      %p104 = por %p102, %p103
      %p105 = scmp.ne.s32.totalorder %s96, %s97
      %p106 = scmp.eq.s32.totalorder %s18, 0
      %p107 = por %p105, %p106
      %p108 = scmp.ne.s32.totalorder %s96, %s97
      %p109 = scmp.eq.s32.totalorder %s19, 3
      %p110 = por %p108, %p109
      %p112 = scmp.ne.s32.totalorder %s97, %s111
      %p113 = scmp.eq.s32.totalorder %s19, 0
      %p114 = por %p112, %p113
      %s116 = sadd.s32 %s115, 1
      %p119 = scmp.eq.s32.totalorder %s13, 3
      %p120 = scmp.ne.s32.totalorder %s115, %s117
      %p121 = scmp.eq.s32.totalorder %s13, 0
      %p122 = por %p120, %p121
      %p123 = scmp.ne.s32.totalorder %s115, %s117
      %p124 = scmp.eq.s32.totalorder %s18, 3
      %p125 = por %p123, %p124
      %p126 = scmp.ne.s32.totalorder %s117, %s118
      %p127 = scmp.eq.s32.totalorder %s18, 0
      %p128 = por %p126, %p127
      %p129 = scmp.ne.s32.totalorder %s117, %s118
      %p130 = scmp.eq.s32.totalorder %s19, 3
      %p131 = por %p129, %p130
      %p133 = scmp.ne.s32.totalorder %s118, %s132
      %p134 = scmp.eq.s32.totalorder %s19, 0
      %p135 = por %p133, %p134
      %s136 = ssub.s32 %s13, %s20
      %p137 = scmp.eq.s32.totalorder %s136, 0
      %s139 = sadd.s32 %s138, 1
      %s140 = scalar_select %p137, %s138, %s139
      %p143 = pneg %p137
      %p144 = scmp.eq.s32.totalorder %s13, 3
      %p145 = por %p143, %p144
      %p146 = scmp.ne.s32.totalorder %s138, %s141
      %p147 = scmp.eq.s32.totalorder %s13, 0
      %p148 = por %p146, %p147
      %p149 = scmp.ne.s32.totalorder %s138, %s141
      %p150 = scmp.eq.s32.totalorder %s18, 3
      %p151 = por %p149, %p150
      %p152 = scmp.ne.s32.totalorder %s141, %s142
      %p153 = scmp.eq.s32.totalorder %s18, 0
      %p154 = por %p152, %p153
      %p155 = scmp.ne.s32.totalorder %s141, %s142
      %p156 = scmp.eq.s32.totalorder %s19, 3
      %p157 = por %p155, %p156
      %p159 = scmp.ne.s32.totalorder %s142, %s158
      %p160 = scmp.eq.s32.totalorder %s19, 0
      %p161 = por %p159, %p160
      %p162 = scmp.le.s32.totalorder 1, %s13
      %p163 = scmp.lt.s32.totalorder %s13, 5
      %p164 = pnand %p162, %p163
      %p165 = pneg %p164
      // Predicated region
      $region9: #{bipartite_gcn_forward.1} parent=5 // pred_check
        _
      $region10: #{bipartite_gcn_forward.1} parent=5 // pred_check_branch
        %167 = sbr.rel (%p164) target = $region12
      $region11: #{bipartite_gcn_forward.1} parent=5 // pred_region
        %s168 = ssub.s32 %s13, 1
        // Predicated region
        $region13: #{bipartite_gcn_forward.1} parent=11 // pred_check
          %p169 = pneg %p34
        $region14: #{bipartite_gcn_forward.1} parent=11 // pred_check_branch
          %171 = sbr.rel (%p169) target = $region16
        $region15: #{bipartite_gcn_forward.1} parent=11 // pred_region
          %173 = vsyncadd [#allocation4], 0
          %s175 = sshll.u32 %s0, 4
          %s176 = int_to_ptr.vmem [resolvable:$true] %s175
          %178 = dma.vmem_to_smem %s176, 16, [#allocation2], [#allocation4]
        $region16: #{bipartite_gcn_forward.1} parent=11 // pred_fallthru
          _
        // Predicated region
        $region17: #{bipartite_gcn_forward.1} parent=11 // pred_check
          %p179 = pneg %p107
        $region18: #{bipartite_gcn_forward.1} parent=11 // pred_check_branch
          %181 = sbr.rel (%p179) target = $region20
        $region19: #{bipartite_gcn_forward.1} parent=11 // pred_region
          %183 = vsyncadd [#allocation3], 0
          %s184 = sshll.u32 %s3, 4
          %s185 = int_to_ptr.hbm [resolvable:$true] %s184
          %s186 = sshll.u32 [#allocation5], 4
          %s187 = int_to_ptr.vmem [resolvable:$true] %s186
          %192 = dma.hbm_to_vmem [thread:$0]  %s185, 7168, %s187, [#allocation3], 64, 64, 4
        $region20: #{bipartite_gcn_forward.1} parent=11 // pred_fallthru
          _
        // Predicated region
        $region21: #{bipartite_gcn_forward.1} parent=11 // pred_check
          %p193 = pneg %p128
        $region22: #{bipartite_gcn_forward.1} parent=11 // pred_check_branch
          %195 = sbr.rel (%p193) target = $region24
        $region23: #{bipartite_gcn_forward.1} parent=11 // pred_region
          _
        $region24: #{bipartite_gcn_forward.1} parent=11 // pred_fallthru
          _
      $region12: #{bipartite_gcn_forward.1} parent=5 // pred_fallthru
        _
      %p196 = scmp.lt.s32.totalorder %s13, 4
      // Predicated region
      $region25: #{bipartite_gcn_forward.1} parent=5 // pred_check
        %p197 = pneg %p196
      $region26: #{bipartite_gcn_forward.1} parent=5 // pred_check_branch
        %199 = sbr.rel (%p197) target = $region28
      $region27: #{bipartite_gcn_forward.1} parent=5 // pred_region
        // Predicated region
        $region29: #{bipartite_gcn_forward.1} parent=27 // pred_check
          %p200 = pneg %p54
        $region30: #{bipartite_gcn_forward.1} parent=27 // pred_check_branch
          %202 = sbr.rel (%p200) target = $region32
        $region31: #{bipartite_gcn_forward.1} parent=27 // pred_region
          %p203 = scmp.lt.s32.totalorder %s13, 3
          %s204 = scalar_select %p203, %s13, 3
          %s205 = smul.addr %s204, 3
          %s206 = smul.addr %s205, 8
          %s207 = scalar_lea.vmem %s1, %s206
        $region32: #{bipartite_gcn_forward.1} parent=27 // pred_fallthru
          _
        // Predicated region
        $region33: #{bipartite_gcn_forward.1} parent=27 // pred_check
          %p208 = pneg %p80
        $region34: #{bipartite_gcn_forward.1} parent=27 // pred_check_branch
          %210 = sbr.rel (%p208) target = $region36
        $region35: #{bipartite_gcn_forward.1} parent=27 // pred_region
          %p211 = scmp.lt.s32.totalorder %s13, 3
          %s212 = scalar_select %p211, %s13, 3
          %s213 = smul.addr %s212, 2
          %s214 = smul.addr %s213, 4
          %s215 = scalar_lea.vmem %s2, %s214
        $region36: #{bipartite_gcn_forward.1} parent=27 // pred_fallthru
          _
      $region28: #{bipartite_gcn_forward.1} parent=5 // pred_fallthru
        _
      %p216 = scmp.le.s32.totalorder 1, %s13
      %p217 = scmp.lt.s32.totalorder %s13, 5
      %p218 = pnand %p216, %p217
      %p219 = pneg %p218
      // Predicated region
      $region37: #{bipartite_gcn_forward.1} parent=5 // pred_check
        _
      $region38: #{bipartite_gcn_forward.1} parent=5 // pred_check_branch
        %221 = sbr.rel (%p218) target = $region40
      $region39: #{bipartite_gcn_forward.1} parent=5 // pred_region
        %s222 = ssub.s32 %s13, 1
        // Predicated region
        $region41: #{bipartite_gcn_forward.1} parent=39 // pred_check
          %p223 = pneg %p34
        $region42: #{bipartite_gcn_forward.1} parent=39 // pred_check_branch
          %225 = sbr.rel (%p223) target = $region44
        $region43: #{bipartite_gcn_forward.1} parent=39 // pred_region
          %227 = dma.done [#allocation4], 16
        $region44: #{bipartite_gcn_forward.1} parent=39 // pred_fallthru
          _
        // Predicated region
        $region45: #{bipartite_gcn_forward.1} parent=39 // pred_check
          %p228 = pneg %p107
        $region46: #{bipartite_gcn_forward.1} parent=39 // pred_check_branch
          %230 = sbr.rel (%p228) target = $region48
        $region47: #{bipartite_gcn_forward.1} parent=39 // pred_region
          %232 = dma.done [#allocation3], 7168
        $region48: #{bipartite_gcn_forward.1} parent=39 // pred_fallthru
          _
        %233 = sfence
        %p234 = pneg %p34
        %p235 = pneg %p31
        %p236 = scmp.lt.s32.totalorder %s18, 3
        %s237 = scalar_select %p236, %s18, 3
        %s238 = smul.addr %s237, 3
        %s239 = smul.addr %s238, 8
        %s240 = scalar_lea.vmem %s1, %s239
        %p241 = pneg %p60
        %p242 = pneg %p57
        %p243 = scmp.lt.s32.totalorder %s18, 3
        %s244 = scalar_select %p243, %s18, 3
        %s245 = smul.addr %s244, 2
        %s246 = smul.addr %s245, 4
        %s247 = scalar_lea.vmem %s2, %s246
        %p248 = pneg %p86
        %p249 = pneg %p83
        %p250 = pneg %p107
        %p251 = pneg %p104
        %p252 = pneg %p128
        %p253 = pneg %p125
        %p254 = pneg %p154
        %p255 = pneg %p151
        %p256 = scmp.lt.s32.totalorder %s18, 3
        %s257 = scalar_select %p256, %s18, 3
        %s258 = smul.addr %s257, 2
        %s259 = smul.addr %s258, 8
        %s260 = scalar_lea.vmem %s5, %s259
        %p261 = scmp.lt.s32.totalorder %s18, 3
        %s262 = scalar_select %p261, %s18, 3
        %s263 = smul.addr %s262, 3
        %s264 = smul.addr %s263, 8
        %s265 = scalar_lea.vmem %s1, %s264
        %p266 = scmp.lt.s32.totalorder %s18, 3
        %s267 = scalar_select %p266, %s18, 3
        %s268 = smul.addr %s267, 2
        %s269 = smul.addr %s268, 4
        %s270 = scalar_lea.vmem %s2, %s269
        %p271 = scmp.lt.s32.totalorder %s18, 3
        %s272 = scalar_select %p271, %s18, 3
        %s273 = smul.addr %s272, 2
        %s274 = smul.addr %s273, 8
        %s275 = scalar_lea.vmem %s5, %s274
        %v276 = vld [vmem:[%s265] sm:$0xff]
        %v277 = vld [vmem:[%s265 + $0x8] sm:$0xff]
        %v278 = vld [vmem:[%s265 + $0x10] sm:$0xff]
        %279 = vxpose.xlu0.b32.start [1/16] %v276, 128
        %280 = vxpose.xlu0.b32.cont [2/16] %v277, 128
        %281 = vxpose.xlu0.b32.cont [3/16] %v278, 128
        %282 = vxpose.xlu0.b32.cont [4/16] 0.0, 128
        %283 = vxpose.xlu0.b32.cont [5/16] 0.0, 128
        %284 = vxpose.xlu0.b32.cont [6/16] 0.0, 128
        %285 = vxpose.xlu0.b32.cont [7/16] 0.0, 128
        %286 = vxpose.xlu0.b32.cont [8/16] 0.0, 128
        %287 = vxpose.xlu0.b32.cont [9/16] 0.0, 128
        %288 = vxpose.xlu0.b32.cont [10/16] 0.0, 128
        %289 = vxpose.xlu0.b32.cont [11/16] 0.0, 128
        %290 = vxpose.xlu0.b32.cont [12/16] 0.0, 128
        %291 = vxpose.xlu0.b32.cont [13/16] 0.0, 128
        %292 = vxpose.xlu0.b32.cont [14/16] 0.0, 128
        %293 = vxpose.xlu0.b32.cont [15/16] 0.0, 128
        %294 = vxpose.xlu0.b32.end [16/16] 0.0, 128
        %v295 = vpop.trf.xlu0
        %v296 = vpop.trf.xlu0
        %v297 = vpop.trf.xlu0
        %v298 = vpop.trf.xlu0
        %v299 = vpop.trf.xlu0
        %v300 = vpop.trf.xlu0
        %v301 = vpop.trf.xlu0
        %v302 = vpop.trf.xlu0
        %v303 = vpop.trf.xlu0
        %v304 = vpop.trf.xlu0
        %v305 = vpop.trf.xlu0
        %v306 = vpop.trf.xlu0
        %v307 = vpop.trf.xlu0
        %v308 = vpop.trf.xlu0
        %v309 = vpop.trf.xlu0
        %v310 = vpop.trf.xlu0
        %v311 = vld [vmem:[%s270] sm:$0xf]
        %v312 = vld [vmem:[%s270 + $0x4] sm:$0xf]
        %v313 = vld [vmem:[#allocation5] sm:$0xf]
        %v314 = vld [vmem:[#allocation5 + $0x4] sm:$0xf]
        %v315 = vld [vmem:[#allocation5 + $0x8] sm:$0xf]
        %v316 = vld [vmem:[#allocation5 + $0xc] sm:$0xf]
        %v317 = vld [vmem:[#allocation5 + $0x10] sm:$0xf]
        %v318 = vld [vmem:[#allocation5 + $0x14] sm:$0xf]
        %v319 = vld [vmem:[#allocation5 + $0x18] sm:$0xf]
        %v320 = vld [vmem:[#allocation5 + $0x1c] sm:$0xf]
        %v321 = vld [vmem:[#allocation5 + $0x20] sm:$0xf]
        %v322 = vld [vmem:[#allocation5 + $0x24] sm:$0xf]
        %v323 = vld [vmem:[#allocation5 + $0x28] sm:$0xf]
        %v324 = vld [vmem:[#allocation5 + $0x2c] sm:$0xf]
        %v325 = vld [vmem:[#allocation5 + $0x30] sm:$0xf]
        %v326 = vld [vmem:[#allocation5 + $0x34] sm:$0xf]
        %v327 = vld [vmem:[#allocation5 + $0x38] sm:$0xf]
        %v328 = vld [vmem:[#allocation5 + $0x3c] sm:$0xf]
        %v329 = vld [vmem:[%s4] sm:$0x1]
        %s330 = sld [smem:[#allocation2]]
        %v333 = vunpack.c.l.b16 %v311
        %v334 = vunpack.c.l.b16 %v312
        %v335 = vpack.c.b16 %v334, %v333
        %v353 = vunpack.c.l.b16 %v313
        %v354 = vunpack.c.l.b16 %v314
        %v355 = vunpack.c.l.b16 %v315
        %v356 = vunpack.c.l.b16 %v316
        %v357 = vunpack.c.l.b16 %v317
        %v358 = vunpack.c.l.b16 %v318
        %v359 = vunpack.c.l.b16 %v319
        %v360 = vunpack.c.l.b16 %v320
        %v361 = vunpack.c.l.b16 %v321
        %v362 = vunpack.c.l.b16 %v322
        %v363 = vunpack.c.l.b16 %v323
        %v364 = vunpack.c.l.b16 %v324
        %v365 = vunpack.c.l.b16 %v325
        %v366 = vunpack.c.l.b16 %v326
        %v367 = vunpack.c.l.b16 %v327
        %v368 = vunpack.c.l.b16 %v328
        %v369 = vpack.c.b16 %v354, %v353
        %v370 = vpack.c.b16 %v356, %v355
        %v371 = vpack.c.b16 %v358, %v357
        %v372 = vpack.c.b16 %v360, %v359
        %v373 = vpack.c.b16 %v362, %v361
        %v374 = vpack.c.b16 %v364, %v363
        %v375 = vpack.c.b16 %v366, %v365
        %v376 = vpack.c.b16 %v368, %v367
        %385 = vmatpush.bf16.msra.mxu0 %v376
        %386 = vmatpush.bf16.msra.mxu0 %v375
        %387 = vmatpush.bf16.msra.mxu0 %v374
        %388 = vmatpush.bf16.msra.mxu0 %v373
        %389 = vmatpush.bf16.msra.mxu0 %v372
        %390 = vmatpush.bf16.msra.mxu0 %v371
        %391 = vmatpush.bf16.msra.mxu0 %v370
        %392 = vmatpush.bf16.msra.mxu0 %v369
        %393 = vmatmul.bf16.gmra.mxu0 %v335
        %v394 = vpop.f32.mrf.mxu0
        %v395 = vadd.f32 0.0, %v394
        %v396 = vpop.f32.mrf.mxu0
        %v397 = vadd.f32 0.0, %v396
        %398 = vdwg.mxu0
        %v400 = vperm.slane %v329, 0
        %vm402 = vcmask 130048
        %v404 = vsel %vm402, %v276, 0
        %v407 = vsel %vm402, %v277, 0
        %v410 = vsel %vm402, %v278, 0
        %412 = vmatpush.msra.mxu0 0.0
        %413 = vmatpush.msra.mxu0 0.0
        %414 = vmatpush.msra.mxu0 0.0
        %415 = vmatpush.msra.mxu0 0.0
        %416 = vmatpush.msra.mxu0 0.0
        %417 = vmatpush.msra.mxu0 0.0
        %418 = vmatpush.msra.mxu0 0.0
        %419 = vmatpush.msra.mxu0 0.0
        %420 = vmatpush.msra.mxu0 0.0
        %421 = vmatpush.msra.mxu0 0.0
        %422 = vmatpush.msra.mxu0 0.0
        %423 = vmatpush.msra.mxu0 0.0
        %424 = vmatpush.msra.mxu0 0.0
        %425 = vmatpush.msra.mxu0 0.0
        %426 = vmatpush.msra.mxu0 %v397
        %427 = vmatpush.msra.mxu0 %v395
        %428 = vmatmul.f32.gmra.mxu0 %v404
        %v429 = vpop.f32.mrf.mxu0
        %v430 = vadd.f32 %v400, %v429
        %431 = vmatmul.f32.gmra.mxu0 %v407
        %v432 = vpop.f32.mrf.mxu0
        %v433 = vadd.f32 %v400, %v432
        %434 = vmatmul.f32.gmra.mxu0 %v410
        %v435 = vpop.f32.mrf.mxu0
        %v436 = vadd.f32 %v400, %v435
        %437 = vdwg.mxu0
        %v438 = vstv %s330
        %v439 = vmul.f32 %v430, %v438
        %v440 = vmul.f32 %v433, %v438
        %v441 = vmul.f32 %v436, %v438
        %v442 = vmax.f32 %v439, 0.0
        %v443 = vmax.f32 %v440, 0.0
        %v444 = vmax.f32 %v441, 0.0
        %v445 = vpack.c.bf16 %v443, %v442
        %v446 = vpack.c.bf16 %v444, %v444
        %s447 = scalar_lea.vmem [#allocation5], 64
        %v448 = vld [vmem:[%s447] sm:$0xf]
        %v449 = vld [vmem:[%s447 + $0x4] sm:$0xf]
        %v450 = vld [vmem:[%s447 + $0x8] sm:$0xf]
        %v451 = vld [vmem:[%s447 + $0xc] sm:$0xf]
        %v452 = vld [vmem:[%s447 + $0x10] sm:$0xf]
        %v453 = vld [vmem:[%s447 + $0x14] sm:$0xf]
        %v454 = vld [vmem:[%s447 + $0x18] sm:$0xf]
        %v455 = vld [vmem:[%s447 + $0x1c] sm:$0xf]
        %v456 = vld [vmem:[%s447 + $0x20] sm:$0xf]
        %v457 = vld [vmem:[%s447 + $0x24] sm:$0xf]
        %v458 = vld [vmem:[%s447 + $0x28] sm:$0xf]
        %v459 = vld [vmem:[%s447 + $0x2c] sm:$0xf]
        %v460 = vld [vmem:[%s447 + $0x30] sm:$0xf]
        %v461 = vld [vmem:[%s447 + $0x34] sm:$0xf]
        %v462 = vld [vmem:[%s447 + $0x38] sm:$0xf]
        %v463 = vld [vmem:[%s447 + $0x3c] sm:$0xf]
        %s464 = scalar_lea.vmem %s4, 1
        %v465 = vld [vmem:[%s464] sm:$0x1]
        %s466 = sld [smem:[#allocation2 + $0x1]]
        %v483 = vunpack.c.l.b16 %v448
        %v484 = vunpack.c.l.b16 %v449
        %v485 = vunpack.c.l.b16 %v450
        %v486 = vunpack.c.l.b16 %v451
        %v487 = vunpack.c.l.b16 %v452
        %v488 = vunpack.c.l.b16 %v453
        %v489 = vunpack.c.l.b16 %v454
        %v490 = vunpack.c.l.b16 %v455
        %v491 = vunpack.c.l.b16 %v456
        %v492 = vunpack.c.l.b16 %v457
        %v493 = vunpack.c.l.b16 %v458
        %v494 = vunpack.c.l.b16 %v459
        %v495 = vunpack.c.l.b16 %v460
        %v496 = vunpack.c.l.b16 %v461
        %v497 = vunpack.c.l.b16 %v462
        %v498 = vunpack.c.l.b16 %v463
        %v499 = vpack.c.b16 %v484, %v483
        %v500 = vpack.c.b16 %v486, %v485
        %v501 = vpack.c.b16 %v488, %v487
        %v502 = vpack.c.b16 %v490, %v489
        %v503 = vpack.c.b16 %v492, %v491
        %v504 = vpack.c.b16 %v494, %v493
        %v505 = vpack.c.b16 %v496, %v495
        %v506 = vpack.c.b16 %v498, %v497
        %515 = vmatpush.bf16.msra.mxu0 %v506
        %516 = vmatpush.bf16.msra.mxu0 %v505
        %517 = vmatpush.bf16.msra.mxu0 %v504
        %518 = vmatpush.bf16.msra.mxu0 %v503
        %519 = vmatpush.bf16.msra.mxu0 %v502
        %520 = vmatpush.bf16.msra.mxu0 %v501
        %521 = vmatpush.bf16.msra.mxu0 %v500
        %522 = vmatpush.bf16.msra.mxu0 %v499
        %523 = vmatmul.bf16.gmra.mxu0 %v445
        %v524 = vpop.f32.mrf.mxu0
        %v525 = vadd.f32 0.0, %v524
        %v526 = vpop.f32.mrf.mxu0
        %v527 = vadd.f32 0.0, %v526
        %528 = vmatmul.bf16.gmra.mxu0 %v446
        %v529 = vpop.f32.mrf.mxu0
        %v530 = vadd.f32 0.0, %v529
        %v531 = vpop.f32.mrf.mxu0
        %532 = vdwg.mxu0
        %v534 = vperm.slane %v465, 0
        %vm536 = vcmask 195584
        %v538 = vsel %vm536, %v295, 0
        %v541 = vsel %vm536, %v296, 0
        %543 = vmatpush.msra.mxu0 0.0
        %544 = vmatpush.msra.mxu0 0.0
        %545 = vmatpush.msra.mxu0 0.0
        %546 = vmatpush.msra.mxu0 0.0
        %547 = vmatpush.msra.mxu0 0.0
        %548 = vmatpush.msra.mxu0 0.0
        %549 = vmatpush.msra.mxu0 0.0
        %550 = vmatpush.msra.mxu0 0.0
        %551 = vmatpush.msra.mxu0 0.0
        %552 = vmatpush.msra.mxu0 0.0
        %553 = vmatpush.msra.mxu0 0.0
        %554 = vmatpush.msra.mxu0 0.0
        %555 = vmatpush.msra.mxu0 0.0
        %556 = vmatpush.msra.mxu0 %v530
        %557 = vmatpush.msra.mxu0 %v527
        %558 = vmatpush.msra.mxu0 %v525
        %559 = vmatmul.f32.gmra.mxu0 %v538
        %v560 = vpop.f32.mrf.mxu0
        %v561 = vadd.f32 %v534, %v560
        %562 = vmatmul.f32.gmra.mxu0 %v541
        %v563 = vpop.f32.mrf.mxu0
        %v564 = vadd.f32 %v534, %v563
        %565 = vdwg.mxu0
        %v566 = vstv %s466
        %v567 = vmul.f32 %v561, %v566
        %v568 = vmul.f32 %v564, %v566
        %v569 = vmax.f32 %v567, 0.0
        %v570 = vmax.f32 %v568, 0.0
        %v571 = vpack.c.bf16 %v570, %v569
        %s572 = scalar_lea.vmem [#allocation5], 128
        %v573 = vld [vmem:[%s572] sm:$0xf]
        %v574 = vld [vmem:[%s572 + $0x4] sm:$0xf]
        %v575 = vld [vmem:[%s572 + $0x8] sm:$0xf]
        %v576 = vld [vmem:[%s572 + $0xc] sm:$0xf]
        %v577 = vld [vmem:[%s572 + $0x10] sm:$0xf]
        %v578 = vld [vmem:[%s572 + $0x14] sm:$0xf]
        %v579 = vld [vmem:[%s572 + $0x18] sm:$0xf]
        %v580 = vld [vmem:[%s572 + $0x1c] sm:$0xf]
        %v581 = vld [vmem:[%s572 + $0x20] sm:$0xf]
        %v582 = vld [vmem:[%s572 + $0x24] sm:$0xf]
        %v583 = vld [vmem:[%s572 + $0x28] sm:$0xf]
        %v584 = vld [vmem:[%s572 + $0x2c] sm:$0xf]
        %v585 = vld [vmem:[%s572 + $0x30] sm:$0xf]
        %v586 = vld [vmem:[%s572 + $0x34] sm:$0xf]
        %v587 = vld [vmem:[%s572 + $0x38] sm:$0xf]
        %v588 = vld [vmem:[%s572 + $0x3c] sm:$0xf]
        %s589 = scalar_lea.vmem %s4, 2
        %v590 = vld [vmem:[%s589] sm:$0x1]
        %s591 = sld [smem:[#allocation2 + $0x2]]
        %v608 = vunpack.c.l.b16 %v573
        %v609 = vunpack.c.l.b16 %v574
        %v610 = vunpack.c.l.b16 %v575
        %v611 = vunpack.c.l.b16 %v576
        %v612 = vunpack.c.l.b16 %v577
        %v613 = vunpack.c.l.b16 %v578
        %v614 = vunpack.c.l.b16 %v579
        %v615 = vunpack.c.l.b16 %v580
        %v616 = vunpack.c.l.b16 %v581
        %v617 = vunpack.c.l.b16 %v582
        %v618 = vunpack.c.l.b16 %v583
        %v619 = vunpack.c.l.b16 %v584
        %v620 = vunpack.c.l.b16 %v585
        %v621 = vunpack.c.l.b16 %v586
        %v622 = vunpack.c.l.b16 %v587
        %v623 = vunpack.c.l.b16 %v588
        %v624 = vpack.c.b16 %v609, %v608
        %v625 = vpack.c.b16 %v611, %v610
        %v626 = vpack.c.b16 %v613, %v612
        %v627 = vpack.c.b16 %v615, %v614
        %v628 = vpack.c.b16 %v617, %v616
        %v629 = vpack.c.b16 %v619, %v618
        %v630 = vpack.c.b16 %v621, %v620
        %v631 = vpack.c.b16 %v623, %v622
        %640 = vmatpush.bf16.msra.mxu0 %v631
        %641 = vmatpush.bf16.msra.mxu0 %v630
        %642 = vmatpush.bf16.msra.mxu0 %v629
        %643 = vmatpush.bf16.msra.mxu0 %v628
        %644 = vmatpush.bf16.msra.mxu0 %v627
        %645 = vmatpush.bf16.msra.mxu0 %v626
        %646 = vmatpush.bf16.msra.mxu0 %v625
        %647 = vmatpush.bf16.msra.mxu0 %v624
        %648 = vmatmul.bf16.gmra.mxu0 %v571
        %v649 = vpop.f32.mrf.mxu0
        %v650 = vadd.f32 0.0, %v649
        %v651 = vpop.f32.mrf.mxu0
        %v652 = vadd.f32 0.0, %v651
        %653 = vdwg.mxu0
        %v655 = vperm.slane %v590, 0
        %657 = vmatpush.msra.mxu0 0.0
        %658 = vmatpush.msra.mxu0 0.0
        %659 = vmatpush.msra.mxu0 0.0
        %660 = vmatpush.msra.mxu0 0.0
        %661 = vmatpush.msra.mxu0 0.0
        %662 = vmatpush.msra.mxu0 0.0
        %663 = vmatpush.msra.mxu0 0.0
        %664 = vmatpush.msra.mxu0 0.0
        %665 = vmatpush.msra.mxu0 0.0
        %666 = vmatpush.msra.mxu0 0.0
        %667 = vmatpush.msra.mxu0 0.0
        %668 = vmatpush.msra.mxu0 0.0
        %669 = vmatpush.msra.mxu0 0.0
        %670 = vmatpush.msra.mxu0 0.0
        %671 = vmatpush.msra.mxu0 %v652
        %672 = vmatpush.msra.mxu0 %v650
        %673 = vmatmul.f32.gmra.mxu0 %v404
        %v674 = vpop.f32.mrf.mxu0
        %v675 = vadd.f32 %v655, %v674
        %676 = vmatmul.f32.gmra.mxu0 %v407
        %v677 = vpop.f32.mrf.mxu0
        %v678 = vadd.f32 %v655, %v677
        %679 = vmatmul.f32.gmra.mxu0 %v410
        %v680 = vpop.f32.mrf.mxu0
        %v681 = vadd.f32 %v655, %v680
        %682 = vdwg.mxu0
        %v683 = vstv %s591
        %v684 = vmul.f32 %v675, %v683
        %v685 = vmul.f32 %v678, %v683
        %v686 = vmul.f32 %v681, %v683
        %v687 = vmax.f32 %v684, 0.0
        %v688 = vmax.f32 %v685, 0.0
        %v689 = vmax.f32 %v686, 0.0
        %v690 = vpack.c.bf16 %v688, %v687
        %v691 = vpack.c.bf16 %v689, %v689
        %s692 = scalar_lea.vmem [#allocation5], 192
        %v693 = vld [vmem:[%s692] sm:$0xf]
        %v694 = vld [vmem:[%s692 + $0x4] sm:$0xf]
        %v695 = vld [vmem:[%s692 + $0x8] sm:$0xf]
        %v696 = vld [vmem:[%s692 + $0xc] sm:$0xf]
        %v697 = vld [vmem:[%s692 + $0x10] sm:$0xf]
        %v698 = vld [vmem:[%s692 + $0x14] sm:$0xf]
        %v699 = vld [vmem:[%s692 + $0x18] sm:$0xf]
        %v700 = vld [vmem:[%s692 + $0x1c] sm:$0xf]
        %v701 = vld [vmem:[%s692 + $0x20] sm:$0xf]
        %v702 = vld [vmem:[%s692 + $0x24] sm:$0xf]
        %v703 = vld [vmem:[%s692 + $0x28] sm:$0xf]
        %v704 = vld [vmem:[%s692 + $0x2c] sm:$0xf]
        %v705 = vld [vmem:[%s692 + $0x30] sm:$0xf]
        %v706 = vld [vmem:[%s692 + $0x34] sm:$0xf]
        %v707 = vld [vmem:[%s692 + $0x38] sm:$0xf]
        %v708 = vld [vmem:[%s692 + $0x3c] sm:$0xf]
        %s709 = scalar_lea.vmem %s4, 3
        %v710 = vld [vmem:[%s709] sm:$0x1]
        %s711 = sld [smem:[#allocation2 + $0x3]]
        %v728 = vunpack.c.l.b16 %v693
        %v729 = vunpack.c.l.b16 %v694
        %v730 = vunpack.c.l.b16 %v695
        %v731 = vunpack.c.l.b16 %v696
        %v732 = vunpack.c.l.b16 %v697
        %v733 = vunpack.c.l.b16 %v698
        %v734 = vunpack.c.l.b16 %v699
        %v735 = vunpack.c.l.b16 %v700
        %v736 = vunpack.c.l.b16 %v701
        %v737 = vunpack.c.l.b16 %v702
        %v738 = vunpack.c.l.b16 %v703
        %v739 = vunpack.c.l.b16 %v704
        %v740 = vunpack.c.l.b16 %v705
        %v741 = vunpack.c.l.b16 %v706
        %v742 = vunpack.c.l.b16 %v707
        %v743 = vunpack.c.l.b16 %v708
        %v744 = vpack.c.b16 %v729, %v728
        %v745 = vpack.c.b16 %v731, %v730
        %v746 = vpack.c.b16 %v733, %v732
        %v747 = vpack.c.b16 %v735, %v734
        %v748 = vpack.c.b16 %v737, %v736
        %v749 = vpack.c.b16 %v739, %v738
        %v750 = vpack.c.b16 %v741, %v740
        %v751 = vpack.c.b16 %v743, %v742
        %760 = vmatpush.bf16.msra.mxu0 %v751
        %761 = vmatpush.bf16.msra.mxu0 %v750
        %762 = vmatpush.bf16.msra.mxu0 %v749
        %763 = vmatpush.bf16.msra.mxu0 %v748
        %764 = vmatpush.bf16.msra.mxu0 %v747
        %765 = vmatpush.bf16.msra.mxu0 %v746
        %766 = vmatpush.bf16.msra.mxu0 %v745
        %767 = vmatpush.bf16.msra.mxu0 %v744
        %768 = vmatmul.bf16.gmra.mxu0 %v690
        %v769 = vpop.f32.mrf.mxu0
        %v770 = vadd.f32 0.0, %v769
        %v771 = vpop.f32.mrf.mxu0
        %v772 = vadd.f32 0.0, %v771
        %773 = vmatmul.bf16.gmra.mxu0 %v691
        %v774 = vpop.f32.mrf.mxu0
        %v775 = vadd.f32 0.0, %v774
        %v776 = vpop.f32.mrf.mxu0
        %777 = vdwg.mxu0
        %v779 = vperm.slane %v710, 0
        %781 = vmatpush.msra.mxu0 0.0
        %782 = vmatpush.msra.mxu0 0.0
        %783 = vmatpush.msra.mxu0 0.0
        %784 = vmatpush.msra.mxu0 0.0
        %785 = vmatpush.msra.mxu0 0.0
        %786 = vmatpush.msra.mxu0 0.0
        %787 = vmatpush.msra.mxu0 0.0
        %788 = vmatpush.msra.mxu0 0.0
        %789 = vmatpush.msra.mxu0 0.0
        %790 = vmatpush.msra.mxu0 0.0
        %791 = vmatpush.msra.mxu0 0.0
        %792 = vmatpush.msra.mxu0 0.0
        %793 = vmatpush.msra.mxu0 0.0
        %794 = vmatpush.msra.mxu0 %v775
        %795 = vmatpush.msra.mxu0 %v772
        %796 = vmatpush.msra.mxu0 %v770
        %797 = vmatmul.f32.gmra.mxu0 %v538
        %v798 = vpop.f32.mrf.mxu0
        %v799 = vadd.f32 %v779, %v798
        %800 = vmatmul.f32.gmra.mxu0 %v541
        %v801 = vpop.f32.mrf.mxu0
        %v802 = vadd.f32 %v779, %v801
        %803 = vdwg.mxu0
        %v804 = vstv %s711
        %v805 = vmul.f32 %v799, %v804
        %v806 = vmul.f32 %v802, %v804
        %v807 = vmax.f32 %v805, 0.0
        %v808 = vmax.f32 %v806, 0.0
        %v809 = vpack.c.bf16 %v808, %v807
        %s810 = scalar_lea.vmem [#allocation5], 256
        %v811 = vld [vmem:[%s810] sm:$0xf]
        %v812 = vld [vmem:[%s810 + $0x4] sm:$0xf]
        %v813 = vld [vmem:[%s810 + $0x8] sm:$0xf]
        %v814 = vld [vmem:[%s810 + $0xc] sm:$0xf]
        %v815 = vld [vmem:[%s810 + $0x10] sm:$0xf]
        %v816 = vld [vmem:[%s810 + $0x14] sm:$0xf]
        %v817 = vld [vmem:[%s810 + $0x18] sm:$0xf]
        %v818 = vld [vmem:[%s810 + $0x1c] sm:$0xf]
        %v819 = vld [vmem:[%s810 + $0x20] sm:$0xf]
        %v820 = vld [vmem:[%s810 + $0x24] sm:$0xf]
        %v821 = vld [vmem:[%s810 + $0x28] sm:$0xf]
        %v822 = vld [vmem:[%s810 + $0x2c] sm:$0xf]
        %v823 = vld [vmem:[%s810 + $0x30] sm:$0xf]
        %v824 = vld [vmem:[%s810 + $0x34] sm:$0xf]
        %v825 = vld [vmem:[%s810 + $0x38] sm:$0xf]
        %v826 = vld [vmem:[%s810 + $0x3c] sm:$0xf]
        %s827 = scalar_lea.vmem %s4, 4
        %v828 = vld [vmem:[%s827] sm:$0x1]
        %s829 = sld [smem:[#allocation2 + $0x4]]
        %v846 = vunpack.c.l.b16 %v811
        %v847 = vunpack.c.l.b16 %v812
        %v848 = vunpack.c.l.b16 %v813
        %v849 = vunpack.c.l.b16 %v814
        %v850 = vunpack.c.l.b16 %v815
        %v851 = vunpack.c.l.b16 %v816
        %v852 = vunpack.c.l.b16 %v817
        %v853 = vunpack.c.l.b16 %v818
        %v854 = vunpack.c.l.b16 %v819
        %v855 = vunpack.c.l.b16 %v820
        %v856 = vunpack.c.l.b16 %v821
        %v857 = vunpack.c.l.b16 %v822
        %v858 = vunpack.c.l.b16 %v823
        %v859 = vunpack.c.l.b16 %v824
        %v860 = vunpack.c.l.b16 %v825
        %v861 = vunpack.c.l.b16 %v826
        %v862 = vpack.c.b16 %v847, %v846
        %v863 = vpack.c.b16 %v849, %v848
        %v864 = vpack.c.b16 %v851, %v850
        %v865 = vpack.c.b16 %v853, %v852
        %v866 = vpack.c.b16 %v855, %v854
        %v867 = vpack.c.b16 %v857, %v856
        %v868 = vpack.c.b16 %v859, %v858
        %v869 = vpack.c.b16 %v861, %v860
        %878 = vmatpush.bf16.msra.mxu0 %v869
        %879 = vmatpush.bf16.msra.mxu0 %v868
        %880 = vmatpush.bf16.msra.mxu0 %v867
        %881 = vmatpush.bf16.msra.mxu0 %v866
        %882 = vmatpush.bf16.msra.mxu0 %v865
        %883 = vmatpush.bf16.msra.mxu0 %v864
        %884 = vmatpush.bf16.msra.mxu0 %v863
        %885 = vmatpush.bf16.msra.mxu0 %v862
        %886 = vmatmul.bf16.gmra.mxu0 %v809
        %v887 = vpop.f32.mrf.mxu0
        %v888 = vadd.f32 0.0, %v887
        %v889 = vpop.f32.mrf.mxu0
        %v890 = vadd.f32 0.0, %v889
        %891 = vdwg.mxu0
        %v893 = vperm.slane %v828, 0
        %895 = vmatpush.msra.mxu0 0.0
        %896 = vmatpush.msra.mxu0 0.0
        %897 = vmatpush.msra.mxu0 0.0
        %898 = vmatpush.msra.mxu0 0.0
        %899 = vmatpush.msra.mxu0 0.0
        %900 = vmatpush.msra.mxu0 0.0
        %901 = vmatpush.msra.mxu0 0.0
        %902 = vmatpush.msra.mxu0 0.0
        %903 = vmatpush.msra.mxu0 0.0
        %904 = vmatpush.msra.mxu0 0.0
        %905 = vmatpush.msra.mxu0 0.0
        %906 = vmatpush.msra.mxu0 0.0
        %907 = vmatpush.msra.mxu0 0.0
        %908 = vmatpush.msra.mxu0 0.0
        %909 = vmatpush.msra.mxu0 %v890
        %910 = vmatpush.msra.mxu0 %v888
        %911 = vmatmul.f32.gmra.mxu0 %v404
        %v912 = vpop.f32.mrf.mxu0
        %v913 = vadd.f32 %v893, %v912
        %914 = vmatmul.f32.gmra.mxu0 %v407
        %v915 = vpop.f32.mrf.mxu0
        %v916 = vadd.f32 %v893, %v915
        %917 = vmatmul.f32.gmra.mxu0 %v410
        %v918 = vpop.f32.mrf.mxu0
        %v919 = vadd.f32 %v893, %v918
        %920 = vdwg.mxu0
        %v921 = vstv %s829
        %v922 = vmul.f32 %v913, %v921
        %v923 = vmul.f32 %v916, %v921
        %v924 = vmul.f32 %v919, %v921
        %v925 = vmax.f32 %v922, 0.0
        %v926 = vmax.f32 %v923, 0.0
        %v927 = vmax.f32 %v924, 0.0
        %v928 = vpack.c.bf16 %v926, %v925
        %v929 = vpack.c.bf16 %v927, %v927
        %s930 = scalar_lea.vmem [#allocation5], 320
        %v931 = vld [vmem:[%s930] sm:$0xf]
        %v932 = vld [vmem:[%s930 + $0x4] sm:$0xf]
        %v933 = vld [vmem:[%s930 + $0x8] sm:$0xf]
        %v934 = vld [vmem:[%s930 + $0xc] sm:$0xf]
        %v935 = vld [vmem:[%s930 + $0x10] sm:$0xf]
        %v936 = vld [vmem:[%s930 + $0x14] sm:$0xf]
        %v937 = vld [vmem:[%s930 + $0x18] sm:$0xf]
        %v938 = vld [vmem:[%s930 + $0x1c] sm:$0xf]
        %v939 = vld [vmem:[%s930 + $0x20] sm:$0xf]
        %v940 = vld [vmem:[%s930 + $0x24] sm:$0xf]
        %v941 = vld [vmem:[%s930 + $0x28] sm:$0xf]
        %v942 = vld [vmem:[%s930 + $0x2c] sm:$0xf]
        %v943 = vld [vmem:[%s930 + $0x30] sm:$0xf]
        %v944 = vld [vmem:[%s930 + $0x34] sm:$0xf]
        %v945 = vld [vmem:[%s930 + $0x38] sm:$0xf]
        %v946 = vld [vmem:[%s930 + $0x3c] sm:$0xf]
        %s947 = scalar_lea.vmem %s4, 5
        %v948 = vld [vmem:[%s947] sm:$0x1]
        %s949 = sld [smem:[#allocation2 + $0x5]]
        %v966 = vunpack.c.l.b16 %v931
        %v967 = vunpack.c.l.b16 %v932
        %v968 = vunpack.c.l.b16 %v933
        %v969 = vunpack.c.l.b16 %v934
        %v970 = vunpack.c.l.b16 %v935
        %v971 = vunpack.c.l.b16 %v936
        %v972 = vunpack.c.l.b16 %v937
        %v973 = vunpack.c.l.b16 %v938
        %v974 = vunpack.c.l.b16 %v939
        %v975 = vunpack.c.l.b16 %v940
        %v976 = vunpack.c.l.b16 %v941
        %v977 = vunpack.c.l.b16 %v942
        %v978 = vunpack.c.l.b16 %v943
        %v979 = vunpack.c.l.b16 %v944
        %v980 = vunpack.c.l.b16 %v945
        %v981 = vunpack.c.l.b16 %v946
        %v982 = vpack.c.b16 %v967, %v966
        %v983 = vpack.c.b16 %v969, %v968
        %v984 = vpack.c.b16 %v971, %v970
        %v985 = vpack.c.b16 %v973, %v972
        %v986 = vpack.c.b16 %v975, %v974
        %v987 = vpack.c.b16 %v977, %v976
        %v988 = vpack.c.b16 %v979, %v978
        %v989 = vpack.c.b16 %v981, %v980
        %998 = vmatpush.bf16.msra.mxu0 %v989
        %999 = vmatpush.bf16.msra.mxu0 %v988
        %1000 = vmatpush.bf16.msra.mxu0 %v987
        %1001 = vmatpush.bf16.msra.mxu0 %v986
        %1002 = vmatpush.bf16.msra.mxu0 %v985
        %1003 = vmatpush.bf16.msra.mxu0 %v984
        %1004 = vmatpush.bf16.msra.mxu0 %v983
        %1005 = vmatpush.bf16.msra.mxu0 %v982
        %1006 = vmatmul.bf16.gmra.mxu0 %v928
        %v1007 = vpop.f32.mrf.mxu0
        %v1008 = vadd.f32 0.0, %v1007
        %v1009 = vpop.f32.mrf.mxu0
        %v1010 = vadd.f32 0.0, %v1009
        %1011 = vmatmul.bf16.gmra.mxu0 %v929
        %v1012 = vpop.f32.mrf.mxu0
        %v1013 = vadd.f32 0.0, %v1012
        %v1014 = vpop.f32.mrf.mxu0
        %1015 = vdwg.mxu0
        %v1017 = vperm.slane %v948, 0
        %1019 = vmatpush.msra.mxu0 0.0
        %1020 = vmatpush.msra.mxu0 0.0
        %1021 = vmatpush.msra.mxu0 0.0
        %1022 = vmatpush.msra.mxu0 0.0
        %1023 = vmatpush.msra.mxu0 0.0
        %1024 = vmatpush.msra.mxu0 0.0
        %1025 = vmatpush.msra.mxu0 0.0
        %1026 = vmatpush.msra.mxu0 0.0
        %1027 = vmatpush.msra.mxu0 0.0
        %1028 = vmatpush.msra.mxu0 0.0
        %1029 = vmatpush.msra.mxu0 0.0
        %1030 = vmatpush.msra.mxu0 0.0
        %1031 = vmatpush.msra.mxu0 0.0
        %1032 = vmatpush.msra.mxu0 %v1013
        %1033 = vmatpush.msra.mxu0 %v1010
        %1034 = vmatpush.msra.mxu0 %v1008
        %1035 = vmatmul.f32.gmra.mxu0 %v538
        %v1036 = vpop.f32.mrf.mxu0
        %v1037 = vadd.f32 %v1017, %v1036
        %1038 = vmatmul.f32.gmra.mxu0 %v541
        %v1039 = vpop.f32.mrf.mxu0
        %v1040 = vadd.f32 %v1017, %v1039
        %1041 = vdwg.mxu0
        %v1042 = vstv %s949
        %v1043 = vmul.f32 %v1037, %v1042
        %v1044 = vmul.f32 %v1040, %v1042
        %v1045 = vmax.f32 %v1043, 0.0
        %v1046 = vmax.f32 %v1044, 0.0
        %v1047 = vpack.c.bf16 %v1046, %v1045
        %s1048 = scalar_lea.vmem [#allocation5], 384
        %v1049 = vld [vmem:[%s1048] sm:$0xf]
        %v1050 = vld [vmem:[%s1048 + $0x4] sm:$0xf]
        %v1051 = vld [vmem:[%s1048 + $0x8] sm:$0xf]
        %v1052 = vld [vmem:[%s1048 + $0xc] sm:$0xf]
        %v1053 = vld [vmem:[%s1048 + $0x10] sm:$0xf]
        %v1054 = vld [vmem:[%s1048 + $0x14] sm:$0xf]
        %v1055 = vld [vmem:[%s1048 + $0x18] sm:$0xf]
        %v1056 = vld [vmem:[%s1048 + $0x1c] sm:$0xf]
        %v1057 = vld [vmem:[%s1048 + $0x20] sm:$0xf]
        %v1058 = vld [vmem:[%s1048 + $0x24] sm:$0xf]
        %v1059 = vld [vmem:[%s1048 + $0x28] sm:$0xf]
        %v1060 = vld [vmem:[%s1048 + $0x2c] sm:$0xf]
        %v1061 = vld [vmem:[%s1048 + $0x30] sm:$0xf]
        %v1062 = vld [vmem:[%s1048 + $0x34] sm:$0xf]
        %v1063 = vld [vmem:[%s1048 + $0x38] sm:$0xf]
        %v1064 = vld [vmem:[%s1048 + $0x3c] sm:$0xf]
        %s1065 = scalar_lea.vmem %s4, 6
        %v1066 = vld [vmem:[%s1065] sm:$0x1]
        %v1068 = vperm.slane %v1066, 0
        %v1086 = vunpack.c.l.b16 %v1049
        %v1087 = vunpack.c.l.b16 %v1050
        %v1088 = vunpack.c.l.b16 %v1051
        %v1089 = vunpack.c.l.b16 %v1052
        %v1090 = vunpack.c.l.b16 %v1053
        %v1091 = vunpack.c.l.b16 %v1054
        %v1092 = vunpack.c.l.b16 %v1055
        %v1093 = vunpack.c.l.b16 %v1056
        %v1094 = vunpack.c.l.b16 %v1057
        %v1095 = vunpack.c.l.b16 %v1058
        %v1096 = vunpack.c.l.b16 %v1059
        %v1097 = vunpack.c.l.b16 %v1060
        %v1098 = vunpack.c.l.b16 %v1061
        %v1099 = vunpack.c.l.b16 %v1062
        %v1100 = vunpack.c.l.b16 %v1063
        %v1101 = vunpack.c.l.b16 %v1064
        %v1102 = vpack.c.b16 %v1087, %v1086
        %v1103 = vpack.c.b16 %v1089, %v1088
        %v1104 = vpack.c.b16 %v1091, %v1090
        %v1105 = vpack.c.b16 %v1093, %v1092
        %v1106 = vpack.c.b16 %v1095, %v1094
        %v1107 = vpack.c.b16 %v1097, %v1096
        %v1108 = vpack.c.b16 %v1099, %v1098
        %v1109 = vpack.c.b16 %v1101, %v1100
        %1118 = vmatpush.bf16.msra.mxu0 %v1109
        %1119 = vmatpush.bf16.msra.mxu0 %v1108
        %1120 = vmatpush.bf16.msra.mxu0 %v1107
        %1121 = vmatpush.bf16.msra.mxu0 %v1106
        %1122 = vmatpush.bf16.msra.mxu0 %v1105
        %1123 = vmatpush.bf16.msra.mxu0 %v1104
        %1124 = vmatpush.bf16.msra.mxu0 %v1103
        %1125 = vmatpush.bf16.msra.mxu0 %v1102
        %1126 = vmatmul.bf16.gmra.mxu0 %v1047
        %v1127 = vpop.f32.mrf.mxu0
        %v1128 = vadd.f32 %v1068, %v1127
        %v1129 = vpop.f32.mrf.mxu0
        %v1130 = vadd.f32 %v1068, %v1129
        %1131 = vdwg.mxu0
        %1132 = vst [vmem:[%s275] sm:$0xff] %v1128
        %1133 = vst [vmem:[%s275 + $0x8] sm:$0xff] %v1130
        %p1134 = scmp.lt.s32.totalorder %s18, 3
        %s1135 = scalar_select %p1134, %s18, 3
        %s1136 = smul.addr %s1135, 2
        %s1137 = smul.addr %s1136, 8
        %s1138 = scalar_lea.vmem %s5, %s1137
        // Predicated region
        $region49: #{bipartite_gcn_forward.1} parent=39 // pred_check
          %p1139 = pneg %p151
        $region50: #{bipartite_gcn_forward.1} parent=39 // pred_check_branch
          %1141 = sbr.rel (%p1139) target = $region52
        $region51: #{bipartite_gcn_forward.1} parent=39 // pred_region
          _
        $region52: #{bipartite_gcn_forward.1} parent=39 // pred_fallthru
          _
      $region40: #{bipartite_gcn_forward.1} parent=5 // pred_fallthru
        _
      %p1142 = scmp.le.s32.totalorder 2, %s13
      // Predicated region
      $region53: #{bipartite_gcn_forward.1} parent=5 // pred_check
        %p1143 = pneg %p1142
      $region54: #{bipartite_gcn_forward.1} parent=5 // pred_check_branch
        %1145 = sbr.rel (%p1143) target = $region56
      $region55: #{bipartite_gcn_forward.1} parent=5 // pred_region
        %s1146 = ssub.s32 %s13, 2
        // Predicated region
        $region57: #{bipartite_gcn_forward.1} parent=55 // pred_check
          %p1147 = pneg %p157
        $region58: #{bipartite_gcn_forward.1} parent=55 // pred_check_branch
          %1149 = sbr.rel (%p1147) target = $region60
        $region59: #{bipartite_gcn_forward.1} parent=55 // pred_region
          %p1150 = scmp.lt.s32.totalorder %s19, 3
          %s1151 = scalar_select %p1150, %s19, 3
          %s1152 = smul.addr %s1151, 2
          %s1153 = smul.addr %s1152, 8
          %s1154 = scalar_lea.vmem %s5, %s1153
        $region60: #{bipartite_gcn_forward.1} parent=55 // pred_fallthru
          _
      $region56: #{bipartite_gcn_forward.1} parent=5 // pred_fallthru
        _
    $region6: #{bipartite_gcn_forward.1} parent=1 // loop_footer
      %s17 = sadd.s32 1, %s13
    $region7: #{bipartite_gcn_forward.1} parent=1 // loop_footer_branch
      %12 = sbr.rel target = $region3
    $region8: #{bipartite_gcn_forward.1} parent=1 // loop_exit
      _
    %1155 = vsyncpa [#allocation3], 1
    %s1156 = scalar_lea.sflag [#allocation3], 1
    %1157 = vsyncpa %s1156, 1
    %1158 = vsyncpa [#allocation4], 1
    %s1159 = scalar_lea.sflag [#allocation4], 1
    %1160 = vsyncpa %s1159, 1

</llo_original>
